<compile_context>
chip_gen: v5e
topology: v5e:2x2
jax: 0.10.0
libtpu: 0.0.40
codegen_flags: <defaults>
</compile_context>

<pallas_src>
import functools

import numpy as np
import jax
import jax.numpy as jnp
from jax.experimental import pallas as pl
from jax.experimental.pallas import tpu as pltpu


def _round_up(x, m):
    return ((x + m - 1) // m) * m


def _vmem_capacity_bytes():
    try:
        info = pltpu.get_tpu_info()
        cap = int(getattr(info, "vmem_capacity_bytes", 0) or 0)
        if cap > 0:
            return cap
    except Exception:
        pass
    return 64 * 1024 * 1024   # v7x-safe default


# ----------------------------------------------------------------------------
# Windowed-DFT weights (deterministic "parameters" = hann windows), cached.
# ----------------------------------------------------------------------------
_W_CACHE = {}


def _get_weights(scale, khop, n_q, nfp):
    """bf16 split windowed-DFT weights: (W_re, W_im), each (n_q, nfp, khop)."""
    key = (scale, khop, n_q, nfp)
    cached = _W_CACHE.get(key)
    if cached is not None:
        return cached
    n_freq = scale // 2 + 1
    win = np.hanning(scale).astype(np.float64)           # symmetric Hann, as in torch module
    n = np.arange(scale, dtype=np.float64)[None, :]
    k = np.arange(nfp, dtype=np.float64)[:, None]
    ang = 2.0 * np.pi * k * n / float(scale)
    wre = win[None, :] * np.cos(ang)
    wim = -win[None, :] * np.sin(ang)
    wre[n_freq:, :] = 0.0                                 # padded frequency rows
    wim[n_freq:, :] = 0.0
    # split the sample axis into n_q shift-chunks of khop samples each
    wre = wre.reshape(nfp, n_q, khop).transpose(1, 0, 2)
    wim = wim.reshape(nfp, n_q, khop).transpose(1, 0, 2)
    out = (jnp.asarray(wre.astype(np.float32)).astype(jnp.bfloat16),
           jnp.asarray(wim.astype(np.float32)).astype(jnp.bfloat16))
    _W_CACHE[key] = out
    return out


# ----------------------------------------------------------------------------
# Generation-aware tile planning.
# ----------------------------------------------------------------------------
def _plan_tiles(B, khop, n_q, n_freq, n_frames):
    """Pick (tile_f, tile_n, vmem_limit_bytes) from the actual VMEM capacity."""
    cap = _vmem_capacity_bytes()
    budget = int(cap * 0.70)                 # headroom for compiler scratch
    nfp8 = _round_up(n_freq, 8)              # sublane padding only (not 128)

    def footprint(tf, tn):
        bf = 2                                            # bf16 bytes
        w = 2 * 2 * n_q * tf * khop * bf                  # W_re+W_im, double-buffered
        xm = 2 * khop * tn * bf                           # signal tile, double-buffered
        xn = 2 * khop * 128 * bf                          # next-tile head
        out = 2 * tf * tn * 4                             # f32 output tile
        tmp = khop * (tn + 128) * bf + 2 * tf * tn * 4 + khop * tn * bf
        return w + xm + xn + out + tmp

    tn_max = max(128, min(2048, _round_up(n_frames, 128)))
    if B == 1 and n_frames > 128:
        # keep >= 2 frame tiles so both v7x TensorCores get work
        tn_max = min(tn_max, max(128, _round_up((n_frames + 1) // 2, 128)))
    tn_list = [t for t in (2048, 1024, 512, 256, 128) if t <= tn_max] or [128]

    tf_list, tf = [], nfp8
    while True:
        tf_list.append(tf)
        if tf <= 8:
            break
        nxt = _round_up((tf + 1) // 2, 8)
        if nxt >= tf:
            break
        tf = nxt

    for tn in tn_list:                        # widest frame tile first (biggest lever)
        for tf in tf_list:                    # then the widest freq tile that fits
            if footprint(tf, tn) <= budget:
                vlim = int(min(cap, max(footprint(tf, tn) + (16 << 20), 32 << 20)))
                return tf, tn, vlim
    tf, tn = tf_list[-1], 128                 # graceful last resort (freq-tiled hard)
    return tf, tn, int(min(cap, max(footprint(tf, tn) + (16 << 20), 32 << 20)))


# ----------------------------------------------------------------------------
# Pallas kernel: in-kernel framing + windowed-DFT matmuls + power epilogue.
# ----------------------------------------------------------------------------
def _stft_power_kernel(wr_ref, wi_ref, xm_ref, xn_ref, o_ref, *, n_q):
    """One (tile_f, tile_n) power-spectrum tile.

    wr_ref/wi_ref : (n_q, tile_f, khop) bf16, grid-invariant along the frame axis
    xm_ref        : (1, khop, tile_n)   bf16 signal blocks (samples x block index)
    xn_ref        : (1, khop, 128)      bf16 head of the next frame tile (overlap)
    o_ref         : (1, tile_f, tile_n) f32 power spectrum tile (freq x frames)
    """
    xm = xm_ref[0]
    tile_n = xm.shape[-1]
    if n_q > 1:
        sig = jnp.concatenate([xm, xn_ref[0]], axis=-1)      # (khop, tile_n + 128)
    else:
        sig = xm
    re = jnp.dot(wr_ref[0], sig[:, :tile_n], preferred_element_type=jnp.float32)
    im = jnp.dot(wi_ref[0], sig[:, :tile_n], preferred_element_type=jnp.float32)
    for q in range(1, n_q):
        rhs = sig[:, q:q + tile_n]                           # lane-shifted view (XLU)
        re = re + jnp.dot(wr_ref[q], rhs, preferred_element_type=jnp.float32)
        im = im + jnp.dot(wi_ref[q], rhs, preferred_element_type=jnp.float32)
    o_ref[0] = re * re + im * im                             # VPU power epilogue, f32


# ----------------------------------------------------------------------------
# Per-scale jitted pipeline: framing -> pad/cast -> pallas_call -> slice.
# ----------------------------------------------------------------------------
@functools.partial(
    jax.jit,
    static_argnames=("scale", "hop", "n_q", "use_blocks", "n_frames", "n_freq",
                     "tile_f", "tile_n", "vmem_limit"),
)
def _scale_power(x, w_re, w_im, *, scale, hop, n_q, use_blocks, n_frames, n_freq,
                 tile_f, tile_n, vmem_limit):
    B = x.shape[0]
    khop = w_re.shape[-1]
    nfp = w_re.shape[1]
    n_frames_pad = _round_up(n_frames, tile_n)
    L = n_frames_pad + 128                                   # +128 lanes for the overlap head

    if use_blocks:
        # cheap non-overlapping framing: xbt[b, r, u] = x[b, u*hop + r]
        nb = n_frames + n_q - 1
        xbt = jnp.transpose(x[:, :nb * khop].reshape(B, nb, khop), (0, 2, 1))
    else:
        # TODO(synk): in-kernel framing only covers hop | scale; other overlaps fall
        # back to this (HBM-heavier) gather front-end feeding the same kernel (n_q=1).
        idx = np.arange(scale)[:, None] + np.arange(n_frames)[None, :] * hop
        xbt = x[:, jnp.asarray(idx)]                         # (B, scale, n_frames)
        nb = n_frames
    xbt = jnp.pad(xbt, ((0, 0), (0, 0), (0, L - nb))).astype(jnp.bfloat16)

    nlb = tile_n // 128
    if use_blocks and n_q > 1:
        xnext_map = lambda f, b, j: (b, 0, (j + 1) * nlb)    # head of the next frame tile
    else:
        xnext_map = lambda f, b, j: (b, 0, 0)                # unused when n_q == 1

    kernel = functools.partial(_stft_power_kernel, n_q=n_q)
    power = pl.pallas_call(
        kernel,
        out_shape=jax.ShapeDtypeStruct((B, nfp, n_frames_pad), jnp.float32),
        grid=(nfp // tile_f, B, n_frames_pad // tile_n),     # freq outermost: weights stay put
        in_specs=[
            pl.BlockSpec((n_q, tile_f, khop), lambda f, b, j: (0, f, 0)),   # W_re
            pl.BlockSpec((n_q, tile_f, khop), lambda f, b, j: (0, f, 0)),   # W_im
            pl.BlockSpec((1, khop, tile_n), lambda f, b, j: (b, 0, j)),     # signal blocks
            pl.BlockSpec((1, khop, 128), xnext_map),                        # overlap head
        ],
        out_specs=pl.BlockSpec((1, tile_f, tile_n), lambda f, b, j: (b, f, j)),
        compiler_params=pltpu.CompilerParams(
            dimension_semantics=("parallel", "parallel", "parallel"),
            vmem_limit_bytes=int(vmem_limit),
        ),
    )(w_re, w_im, xbt, xbt)
    return power[:, :n_freq, :n_frames]                      # torch layout (B, n_freq, n_frames)


# ----------------------------------------------------------------------------
# Forward pass of the MultiscaleFFT module.
# ----------------------------------------------------------------------------
def multiscale_fft(x, scales, overlap=0.75, reshape=True):
    """x: (B, T) float32 signal.  Returns nested [batch][scale] lists like torch."""
    x = jnp.asarray(x, dtype=jnp.float32)
    B, T = x.shape
    outs = []
    for scale in scales:
        hop = int((1.0 - overlap) * scale)
        if hop <= 0 or T < scale:
            raise ValueError("invalid scale/overlap/signal-length combination")
        n_frames = 1 + (T - scale) // hop
        n_freq = scale // 2 + 1
        use_blocks = (scale % hop == 0) and (scale // hop <= 8)
        n_q = scale // hop if use_blocks else 1
        khop = hop if use_blocks else scale
        tile_f, tile_n, vmem_limit = _plan_tiles(B, khop, n_q, n_freq, n_frames)
        nfp = _round_up(n_freq, tile_f)
        w_re, w_im = _get_weights(scale, khop, n_q, nfp)
        outs.append(_scale_power(
            x, w_re, w_im, scale=scale, hop=hop, n_q=n_q, use_blocks=use_blocks,
            n_frames=n_frames, n_freq=n_freq, tile_f=tile_f, tile_n=tile_n,
            vmem_limit=vmem_limit))
    if reshape:
        return [[outs[s][b] for s in range(len(scales))] for b in range(B)]
    return outs


if __name__ == "__main__":
    key = jax.random.PRNGKey(0)
    B, T = 2, 512
    scales = [64, 128, 256]
    overlap = 0.75
    x = jax.random.normal(key, (B, T), dtype=jnp.float32)

    out = multiscale_fft(x, scales, overlap=overlap, reshape=True)
    out = jax.block_until_ready(out)

    # Correctness check against an rfft reference (same window / framing semantics).
    # Tolerances account for the bf16 matmul inputs (f32 accumulation).
    x_np = np.asarray(x)
    for s, scale in enumerate(scales):
        hop = int((1.0 - overlap) * scale)
        n_frames = 1 + (T - scale) // hop
        n_freq = scale // 2 + 1
        win = np.hanning(scale).astype(np.float32)
        fidx = np.arange(n_frames)[:, None] * hop + np.arange(scale)[None, :]
        wframes = x_np[:, fidx] * win                         # (B, n_frames, scale)
        spec = np.fft.rfft(wframes, axis=-1)
        ref = (spec.real ** 2 + spec.imag ** 2).transpose(0, 2, 1)   # (B, n_freq, n_frames)
        for b in range(B):
            got = np.asarray(out[b][s])
            assert got.shape == (n_freq, n_frames), got.shape
            atol = 1e-2 * float(np.max(ref[b])) + 1e-6
            np.testing.assert_allclose(got, ref[b], rtol=1e-1, atol=atol)

    print("KERNEL_OK")
</pallas_src>

<mosaic_0001>
module attributes {stable_mosaic.version = 11 : i64} {
  func.func @_stft_power_kernel(%arg0: i32, %arg1: i32, %arg2: i32, %arg3: memref<4x40x16xbf16, #tpu.memory_space<vmem>>, %arg4: memref<4x40x16xbf16, #tpu.memory_space<vmem>>, %arg5: memref<1x16x128xbf16, #tpu.memory_space<vmem>>, %arg6: memref<1x16x128xbf16, #tpu.memory_space<vmem>>, %arg7: memref<1x40x128xf32, #tpu.memory_space<vmem>>) attributes {dimension_semantics = [#tpu.dimension_semantics<parallel>, #tpu.dimension_semantics<parallel>, #tpu.dimension_semantics<parallel>], iteration_bounds = array<i64: 1, 2, 1>, scalar_prefetch = 0 : i64, scratch_operands = 0 : i64, tpu.core_type = #tpu.core_type<tc>, window_params = [{transform_indices = @transform_0, window_bounds = array<i64: 4, 40, 16>}, {transform_indices = @transform_1, window_bounds = array<i64: 4, 40, 16>}, {transform_indices = @transform_2, window_bounds = array<i64: 1, 16, 128>}, {transform_indices = @transform_3, window_bounds = array<i64: 1, 16, 128>}, {transform_indices = @transform_4, window_bounds = array<i64: 1, 40, 128>}]} {
    %c0 = arith.constant 0 : index
    %c0_0 = arith.constant 0 : index
    %c0_1 = arith.constant 0 : index
    %0 = vector.load %arg5[%c0, %c0_0, %c0_1] : memref<1x16x128xbf16, #tpu.memory_space<vmem>>, vector<1x16x128xbf16>
    %1 = vector.shape_cast %0 : vector<1x16x128xbf16> to vector<16x128xbf16>
    %c0_2 = arith.constant 0 : index
    %c0_3 = arith.constant 0 : index
    %c0_4 = arith.constant 0 : index
    %2 = vector.load %arg6[%c0_2, %c0_3, %c0_4] : memref<1x16x128xbf16, #tpu.memory_space<vmem>>, vector<1x16x128xbf16>
    %3 = vector.shape_cast %2 : vector<1x16x128xbf16> to vector<16x128xbf16>
    %4 = tpu.concatenate %1, %3 in 1 : vector<16x128xbf16>, vector<16x128xbf16> -> vector<16x256xbf16>
    %c0_5 = arith.constant 0 : index
    %c0_6 = arith.constant 0 : index
    %c0_7 = arith.constant 0 : index
    %5 = vector.load %arg3[%c0_5, %c0_6, %c0_7] : memref<4x40x16xbf16, #tpu.memory_space<vmem>>, vector<1x40x16xbf16>
    %6 = vector.shape_cast %5 : vector<1x40x16xbf16> to vector<40x16xbf16>
    %7 = vector.extract_strided_slice %4 {offsets = [0, 0], sizes = [16, 128], strides = [1, 1]} : vector<16x256xbf16> to vector<16x128xbf16>
    %cst = arith.constant dense<0.000000e+00> : vector<40x128xf32>
    %8 = tpu.matmul %6, %7, %cst {dimension_numbers = #tpu.dot_dimension_numbers<[1], [0], [0], [1], [0, 0, 1, 1], [], []>} : vector<40x16xbf16>, vector<16x128xbf16>, vector<40x128xf32> -> vector<40x128xf32>
    %c0_8 = arith.constant 0 : index
    %c0_9 = arith.constant 0 : index
    %c0_10 = arith.constant 0 : index
    %9 = vector.load %arg4[%c0_8, %c0_9, %c0_10] : memref<4x40x16xbf16, #tpu.memory_space<vmem>>, vector<1x40x16xbf16>
    %10 = vector.shape_cast %9 : vector<1x40x16xbf16> to vector<40x16xbf16>
    %11 = vector.extract_strided_slice %4 {offsets = [0, 0], sizes = [16, 128], strides = [1, 1]} : vector<16x256xbf16> to vector<16x128xbf16>
    %cst_11 = arith.constant dense<0.000000e+00> : vector<40x128xf32>
    %12 = tpu.matmul %10, %11, %cst_11 {dimension_numbers = #tpu.dot_dimension_numbers<[1], [0], [0], [1], [0, 0, 1, 1], [], []>} : vector<40x16xbf16>, vector<16x128xbf16>, vector<40x128xf32> -> vector<40x128xf32>
    %13 = vector.extract_strided_slice %4 {offsets = [0, 1], sizes = [16, 128], strides = [1, 1]} : vector<16x256xbf16> to vector<16x128xbf16>
    %c1 = arith.constant 1 : index
    %c0_12 = arith.constant 0 : index
    %c0_13 = arith.constant 0 : index
    %14 = vector.load %arg3[%c1, %c0_12, %c0_13] : memref<4x40x16xbf16, #tpu.memory_space<vmem>>, vector<1x40x16xbf16>
    %15 = vector.shape_cast %14 : vector<1x40x16xbf16> to vector<40x16xbf16>
    %cst_14 = arith.constant dense<0.000000e+00> : vector<40x128xf32>
    %16 = tpu.matmul %15, %13, %cst_14 {dimension_numbers = #tpu.dot_dimension_numbers<[1], [0], [0], [1], [0, 0, 1, 1], [], []>} : vector<40x16xbf16>, vector<16x128xbf16>, vector<40x128xf32> -> vector<40x128xf32>
    %17 = arith.addf %8, %16 : vector<40x128xf32>
    %c1_15 = arith.constant 1 : index
    %c0_16 = arith.constant 0 : index
    %c0_17 = arith.constant 0 : index
    %18 = vector.load %arg4[%c1_15, %c0_16, %c0_17] : memref<4x40x16xbf16, #tpu.memory_space<vmem>>, vector<1x40x16xbf16>
    %19 = vector.shape_cast %18 : vector<1x40x16xbf16> to vector<40x16xbf16>
    %cst_18 = arith.constant dense<0.000000e+00> : vector<40x128xf32>
    %20 = tpu.matmul %19, %13, %cst_18 {dimension_numbers = #tpu.dot_dimension_numbers<[1], [0], [0], [1], [0, 0, 1, 1], [], []>} : vector<40x16xbf16>, vector<16x128xbf16>, vector<40x128xf32> -> vector<40x128xf32>
    %21 = arith.addf %12, %20 : vector<40x128xf32>
    %22 = vector.extract_strided_slice %4 {offsets = [0, 2], sizes = [16, 128], strides = [1, 1]} : vector<16x256xbf16> to vector<16x128xbf16>
    %c2 = arith.constant 2 : index
    %c0_19 = arith.constant 0 : index
    %c0_20 = arith.constant 0 : index
    %23 = vector.load %arg3[%c2, %c0_19, %c0_20] : memref<4x40x16xbf16, #tpu.memory_space<vmem>>, vector<1x40x16xbf16>
    %24 = vector.shape_cast %23 : vector<1x40x16xbf16> to vector<40x16xbf16>
    %cst_21 = arith.constant dense<0.000000e+00> : vector<40x128xf32>
    %25 = tpu.matmul %24, %22, %cst_21 {dimension_numbers = #tpu.dot_dimension_numbers<[1], [0], [0], [1], [0, 0, 1, 1], [], []>} : vector<40x16xbf16>, vector<16x128xbf16>, vector<40x128xf32> -> vector<40x128xf32>
    %26 = arith.addf %17, %25 : vector<40x128xf32>
    %c2_22 = arith.constant 2 : index
    %c0_23 = arith.constant 0 : index
    %c0_24 = arith.constant 0 : index
    %27 = vector.load %arg4[%c2_22, %c0_23, %c0_24] : memref<4x40x16xbf16, #tpu.memory_space<vmem>>, vector<1x40x16xbf16>
    %28 = vector.shape_cast %27 : vector<1x40x16xbf16> to vector<40x16xbf16>
    %cst_25 = arith.constant dense<0.000000e+00> : vector<40x128xf32>
    %29 = tpu.matmul %28, %22, %cst_25 {dimension_numbers = #tpu.dot_dimension_numbers<[1], [0], [0], [1], [0, 0, 1, 1], [], []>} : vector<40x16xbf16>, vector<16x128xbf16>, vector<40x128xf32> -> vector<40x128xf32>
    %30 = arith.addf %21, %29 : vector<40x128xf32>
    %31 = vector.extract_strided_slice %4 {offsets = [0, 3], sizes = [16, 128], strides = [1, 1]} : vector<16x256xbf16> to vector<16x128xbf16>
    %c3 = arith.constant 3 : index
    %c0_26 = arith.constant 0 : index
    %c0_27 = arith.constant 0 : index
    %32 = vector.load %arg3[%c3, %c0_26, %c0_27] : memref<4x40x16xbf16, #tpu.memory_space<vmem>>, vector<1x40x16xbf16>
    %33 = vector.shape_cast %32 : vector<1x40x16xbf16> to vector<40x16xbf16>
    %cst_28 = arith.constant dense<0.000000e+00> : vector<40x128xf32>
    %34 = tpu.matmul %33, %31, %cst_28 {dimension_numbers = #tpu.dot_dimension_numbers<[1], [0], [0], [1], [0, 0, 1, 1], [], []>} : vector<40x16xbf16>, vector<16x128xbf16>, vector<40x128xf32> -> vector<40x128xf32>
    %35 = arith.addf %26, %34 : vector<40x128xf32>
    %c3_29 = arith.constant 3 : index
    %c0_30 = arith.constant 0 : index
    %c0_31 = arith.constant 0 : index
    %36 = vector.load %arg4[%c3_29, %c0_30, %c0_31] : memref<4x40x16xbf16, #tpu.memory_space<vmem>>, vector<1x40x16xbf16>
    %37 = vector.shape_cast %36 : vector<1x40x16xbf16> to vector<40x16xbf16>
    %cst_32 = arith.constant dense<0.000000e+00> : vector<40x128xf32>
    %38 = tpu.matmul %37, %31, %cst_32 {dimension_numbers = #tpu.dot_dimension_numbers<[1], [0], [0], [1], [0, 0, 1, 1], [], []>} : vector<40x16xbf16>, vector<16x128xbf16>, vector<40x128xf32> -> vector<40x128xf32>
    %39 = arith.addf %30, %38 : vector<40x128xf32>
    %40 = arith.mulf %35, %35 : vector<40x128xf32>
    %41 = arith.mulf %39, %39 : vector<40x128xf32>
    %42 = arith.addf %40, %41 : vector<40x128xf32>
    %c0_33 = arith.constant 0 : index
    %c0_34 = arith.constant 0 : index
    %c0_35 = arith.constant 0 : index
    %43 = vector.load %arg7[%c0_33, %c0_34, %c0_35] : memref<1x40x128xf32, #tpu.memory_space<vmem>>, vector<1x40x128xf32>
    %44 = vector.shape_cast %43 : vector<1x40x128xf32> to vector<40x128xf32>
    %45 = vector.shape_cast %42 : vector<40x128xf32> to vector<1x40x128xf32>
    tpu.vector_store %arg7[%c0_33, %c0_34, %c0_35], %45 {strides = array<i32>} : memref<1x40x128xf32, #tpu.memory_space<vmem>>, vector<1x40x128xf32>,
    return
  }
  func.func @transform_0(%arg0: i32, %arg1: i32, %arg2: i32) -> (i32, i32, i32) {
    %c0_i32 = arith.constant 0 : i32
    %c0_i32_0 = arith.constant 0 : i32
    %c0_i32_1 = arith.constant 0 : i32
    return %c0_i32, %arg0, %c0_i32_0 : i32, i32, i32
  }
  func.func @transform_1(%arg0: i32, %arg1: i32, %arg2: i32) -> (i32, i32, i32) {
    %c0_i32 = arith.constant 0 : i32
    %c0_i32_0 = arith.constant 0 : i32
    %c0_i32_1 = arith.constant 0 : i32
    return %c0_i32, %arg0, %c0_i32_0 : i32, i32, i32
  }
  func.func @transform_2(%arg0: i32, %arg1: i32, %arg2: i32) -> (i32, i32, i32) {
    %c0_i32 = arith.constant 0 : i32
    %c0_i32_0 = arith.constant 0 : i32
    return %arg1, %c0_i32, %arg2 : i32, i32, i32
  }
  func.func @transform_3(%arg0: i32, %arg1: i32, %arg2: i32) -> (i32, i32, i32) {
    %c1_i32 = arith.constant 1 : i32
    %0 = arith.addi %arg2, %c1_i32 : i32
    %c1_i32_0 = arith.constant 1 : i32
    %1 = arith.muli %0, %c1_i32_0 : i32
    %c0_i32 = arith.constant 0 : i32
    %c0_i32_1 = arith.constant 0 : i32
    return %arg1, %c0_i32, %1 : i32, i32, i32
  }
  func.func @transform_4(%arg0: i32, %arg1: i32, %arg2: i32) -> (i32, i32, i32) {
    %c0_i32 = arith.constant 0 : i32
    return %arg1, %arg0, %arg2 : i32, i32, i32
  }
}

</mosaic_0001>

<llo_original>
// kernel: _scale_power.1
$region0: #{_scale_power.1}
  #allocation0 [shape = 'u32[]', space=smem, size = 0x4, offset = 0x4, fixed_abs, tag = 'smem constant byte address 0x4 - core index']
  #allocation1 [shape = 'u32[72,128]{1,0:T(1,128)}', space=vmem, size = 0x9000, scoped, tag = 'internal scratch']
  %s0 = inlined_call_operand.vmem [shape: bf16[4,40,16], index: 0, kind: input, shape index: {}]
  %s1 = inlined_call_operand.vmem [shape: bf16[4,40,16], index: 1, kind: input, shape index: {}]
  %s2 = inlined_call_operand.vmem [shape: bf16[2,16,256], index: 2, kind: input, shape index: {}, may-alias: {2,3}]
  %s3 = inlined_call_operand.vmem [shape: bf16[2,16,256], index: 3, kind: input, shape index: {}, may-alias: {2,3}]
  %s4 = inlined_call_operand.vmem [shape: f32[2,40,128], index: 4, kind: output, shape index: {}]
  %s5 = sld [smem:[#allocation0]]
  $region131: #{_scale_power.1} parent=0
    _
  %s7 = ssub.s32 1, %s5
  %s8 = scalar_select 0, %s7, %s5
  $region1: #{_scale_power.1} parent=0
    #allocation2 [shape = 'u8[8192]{0}', space=vmem, size = 0x2000, scoped, tag = 'input window, operand 2']
    #allocation3 [shape = 'u8[8192]{0}', space=vmem, size = 0x2000, scoped, tag = 'input window, operand 3']
    loop: start=0, step=1, limit=4
    $region2: #{_scale_power.1} parent=1 // loop_pre_header
      _
    $region3: #{_scale_power.1} parent=1 // loop_header
      %s10 = sphi 0, %s14
      %p11 = scmp.ge.s32.totalorder %s10, 4
      %s17 = sphi 0, %s36
      %s18 = sphi 0, %s32
      %s19 = sphi 0, %s28
      %s20 = sphi 0, %s17
      %s21 = sphi 0, %s18
      %s22 = sphi 0, %s19
      %s23 = sphi 0, %s20
      %s24 = sphi 0, %s21
      %s25 = sphi 0, %s22
      %s39 = sphi 0, %s41
      %s42 = sphi 0, %s39
      %s43 = sphi 0, %s42
      %s59 = sphi 0, %s43
      %s65 = sphi 0, %s67
      %s68 = sphi 0, %s65
      %s69 = sphi 0, %s68
      %s85 = sphi 0, %s69
      %s93 = sphi 0, %s95
      %s96 = sphi 0, %s93
      %s97 = sphi 0, %s96
      %s113 = sphi 0, %s97
      %s123 = sphi 0, %s125
      %s126 = sphi 0, %s123
      %s127 = sphi 0, %s126
      %s143 = sphi 0, %s127
      %s153 = sphi 0, %s155
      %s156 = sphi 0, %s153
      %s157 = sphi 0, %s156
      %s173 = sphi 0, %s157
    $region4: #{_scale_power.1} parent=1 // loop_header_branch
      %13 = sbr.rel (%p11) target = $region8
    $region5: #{_scale_power.1} parent=1 // loop_body
      %s15 = ssub.s32 %s10, 1
      %s16 = ssub.s32 %s10, 2
      %s26 = sadd.s32 1, %s19
      %p27 = scmp.ge.s32.totalorder %s26, 1
      %s28 = scalar_select %p27, 0, %s26
      %s29 = sadd.s32 1, %s18
      %s30 = scalar_select %p27, %s29, %s18
      %p31 = scmp.ge.s32.totalorder %s30, 2
      %s32 = scalar_select %p31, 0, %s30
      %s33 = sadd.s32 1, %s17
      %s34 = scalar_select %p31, %s33, %s17
      %p35 = scmp.ge.s32.totalorder %s34, 1
      %s36 = scalar_select %p35, 0, %s34
      %s37 = ssub.s32 %s17, %s36
      %p38 = scmp.eq.s32.totalorder %s37, 0
      %s40 = sadd.s32 %s39, 1
      %s41 = scalar_select %p38, %s39, %s40
      %p44 = pneg %p38
      %p45 = scmp.eq.s32.totalorder %s10, 1
      %p46 = por %p44, %p45
      %p47 = scmp.ne.s32.totalorder %s39, %s42
      %p48 = scmp.eq.s32.totalorder %s10, 0
      %p49 = por %p47, %p48
      %p50 = scmp.ne.s32.totalorder %s39, %s42
      %p51 = scmp.eq.s32.totalorder %s15, 1
      %p52 = por %p50, %p51
      %p53 = scmp.ne.s32.totalorder %s42, %s43
      %p54 = scmp.eq.s32.totalorder %s15, 0
      %p55 = por %p53, %p54
      %p56 = scmp.ne.s32.totalorder %s42, %s43
      %p57 = scmp.eq.s32.totalorder %s16, 1
      %p58 = por %p56, %p57
      %p60 = scmp.ne.s32.totalorder %s43, %s59
      %p61 = scmp.eq.s32.totalorder %s16, 0
      %p62 = por %p60, %p61
      %s63 = ssub.s32 %s17, %s36
      %p64 = scmp.eq.s32.totalorder %s63, 0
      %s66 = sadd.s32 %s65, 1
      %s67 = scalar_select %p64, %s65, %s66
      %p70 = pneg %p64
      %p71 = scmp.eq.s32.totalorder %s10, 1
      %p72 = por %p70, %p71
      %p73 = scmp.ne.s32.totalorder %s65, %s68
      %p74 = scmp.eq.s32.totalorder %s10, 0
      %p75 = por %p73, %p74
      %p76 = scmp.ne.s32.totalorder %s65, %s68
      %p77 = scmp.eq.s32.totalorder %s15, 1
      %p78 = por %p76, %p77
      %p79 = scmp.ne.s32.totalorder %s68, %s69
      %p80 = scmp.eq.s32.totalorder %s15, 0
      %p81 = por %p79, %p80
      %p82 = scmp.ne.s32.totalorder %s68, %s69
      %p83 = scmp.eq.s32.totalorder %s16, 1
      %p84 = por %p82, %p83
      %p86 = scmp.ne.s32.totalorder %s69, %s85
      %p87 = scmp.eq.s32.totalorder %s16, 0
      %p88 = por %p86, %p87
      %s89 = ssub.s32 %s18, %s32
      %s90 = ssub.s32 %s19, %s28
      %s91 = sor.u32 %s89, %s90
      %p92 = scmp.eq.s32.totalorder %s91, 0
      %s94 = sadd.s32 %s93, 1
      %s95 = scalar_select %p92, %s93, %s94
      %p98 = pneg %p92
      %p99 = scmp.eq.s32.totalorder %s10, 1
      %p100 = por %p98, %p99
      %p101 = scmp.ne.s32.totalorder %s93, %s96
      %p102 = scmp.eq.s32.totalorder %s10, 0
      %p103 = por %p101, %p102
      %p104 = scmp.ne.s32.totalorder %s93, %s96
      %p105 = scmp.eq.s32.totalorder %s15, 1
      %p106 = por %p104, %p105
      %p107 = scmp.ne.s32.totalorder %s96, %s97
      %p108 = scmp.eq.s32.totalorder %s15, 0
      %p109 = por %p107, %p108
      %p110 = scmp.ne.s32.totalorder %s96, %s97
      %p111 = scmp.eq.s32.totalorder %s16, 1
      %p112 = por %p110, %p111
      %p114 = scmp.ne.s32.totalorder %s97, %s113
      %p115 = scmp.eq.s32.totalorder %s16, 0
      %p116 = por %p114, %p115
      %s117 = sadd.s32 %s19, 1
      %s118 = sadd.s32 %s28, 1
      %s119 = ssub.s32 %s18, %s32
      %s120 = ssub.s32 %s117, %s118
      %s121 = sor.u32 %s119, %s120
      %p122 = scmp.eq.s32.totalorder %s121, 0
      %s124 = sadd.s32 %s123, 1
      %s125 = scalar_select %p122, %s123, %s124
      %p128 = pneg %p122
      %p129 = scmp.eq.s32.totalorder %s10, 1
      %p130 = por %p128, %p129
      %p131 = scmp.ne.s32.totalorder %s123, %s126
      %p132 = scmp.eq.s32.totalorder %s10, 0
      %p133 = por %p131, %p132
      %p134 = scmp.ne.s32.totalorder %s123, %s126
      %p135 = scmp.eq.s32.totalorder %s15, 1
      %p136 = por %p134, %p135
      %p137 = scmp.ne.s32.totalorder %s126, %s127
      %p138 = scmp.eq.s32.totalorder %s15, 0
      %p139 = por %p137, %p138
      %p140 = scmp.ne.s32.totalorder %s126, %s127
      %p141 = scmp.eq.s32.totalorder %s16, 1
      %p142 = por %p140, %p141
      %p144 = scmp.ne.s32.totalorder %s127, %s143
      %p145 = scmp.eq.s32.totalorder %s16, 0
      %p146 = por %p144, %p145
      %s147 = ssub.s32 %s18, %s32
      %s148 = ssub.s32 %s17, %s36
      %s149 = sor.u32 %s147, %s148
      %s150 = ssub.s32 %s19, %s28
      %s151 = sor.u32 %s149, %s150
      %p152 = scmp.eq.s32.totalorder %s151, 0
      %s154 = sadd.s32 %s153, 1
      %s155 = scalar_select %p152, %s153, %s154
      %p158 = pneg %p152
      %p159 = scmp.eq.s32.totalorder %s10, 1
      %p160 = por %p158, %p159
      %p161 = scmp.ne.s32.totalorder %s153, %s156
      %p162 = scmp.eq.s32.totalorder %s10, 0
      %p163 = por %p161, %p162
      %p164 = scmp.ne.s32.totalorder %s153, %s156
      %p165 = scmp.eq.s32.totalorder %s15, 1
      %p166 = por %p164, %p165
      %p167 = scmp.ne.s32.totalorder %s156, %s157
      %p168 = scmp.eq.s32.totalorder %s15, 0
      %p169 = por %p167, %p168
      %p170 = scmp.ne.s32.totalorder %s156, %s157
      %p171 = scmp.eq.s32.totalorder %s16, 1
      %p172 = por %p170, %p171
      %p174 = scmp.ne.s32.totalorder %s157, %s173
      %p175 = scmp.eq.s32.totalorder %s16, 0
      %p176 = por %p174, %p175
      %p177 = scmp.le.s32.totalorder 1, %s10
      %p178 = scmp.lt.s32.totalorder %s10, 3
      %p179 = pnand %p177, %p178
      %p180 = pneg %p179
      // Predicated region
      $region9: #{_scale_power.1} parent=5 // pred_check
        _
      $region10: #{_scale_power.1} parent=5 // pred_check_branch
        %182 = sbr.rel (%p179) target = $region12
      $region11: #{_scale_power.1} parent=5 // pred_region
        %s183 = ssub.s32 %s10, 1
        // Predicated region
        $region13: #{_scale_power.1} parent=11 // pred_check
          %p184 = pneg %p55
        $region14: #{_scale_power.1} parent=11 // pred_check_branch
          %186 = sbr.rel (%p184) target = $region16
        $region15: #{_scale_power.1} parent=11 // pred_region
          %s187 = smul.u32 5, %s20
          %p188 = scmp.lt.s32.totalorder %s187, 4
          %s189 = scalar_select %p188, %s187, 4
          %s190 = smul.addr %s189, 4
          %s191 = scalar_lea.vmem %s0, %s190
          %s192 = smul.u32 5, %s20
        $region16: #{_scale_power.1} parent=11 // pred_fallthru
          _
        // Predicated region
        $region17: #{_scale_power.1} parent=11 // pred_check
          %p193 = pneg %p81
        $region18: #{_scale_power.1} parent=11 // pred_check_branch
          %195 = sbr.rel (%p193) target = $region20
        $region19: #{_scale_power.1} parent=11 // pred_region
          %s196 = smul.u32 5, %s20
          %p197 = scmp.lt.s32.totalorder %s196, 4
          %s198 = scalar_select %p197, %s196, 4
          %s199 = smul.addr %s198, 4
          %s200 = scalar_lea.vmem %s1, %s199
          %s201 = smul.u32 5, %s20
        $region20: #{_scale_power.1} parent=11 // pred_fallthru
          _
      $region12: #{_scale_power.1} parent=5 // pred_fallthru
        _
      %p202 = scmp.lt.s32.totalorder %s10, 2
      // Predicated region
      $region21: #{_scale_power.1} parent=5 // pred_check
        %p203 = pneg %p202
      $region22: #{_scale_power.1} parent=5 // pred_check_branch
        %205 = sbr.rel (%p203) target = $region24
      $region23: #{_scale_power.1} parent=5 // pred_region
        // Predicated region
        $region25: #{_scale_power.1} parent=23 // pred_check
          %p206 = pneg %p103
        $region26: #{_scale_power.1} parent=23 // pred_check_branch
          %208 = sbr.rel (%p206) target = $region28
        $region27: #{_scale_power.1} parent=23 // pred_region
          %s209 = sand.u32 %s93, 1
          %s210 = sand.u32 %s93, 1
          %s211 = smul.addr %s210, 8
          %s212 = scalar_lea.vmem [#allocation2], %s211
          %s213 = smul.addr %s18, 4
          %s214 = sadd.s32 %s19, %s213
          %s215 = smul.addr %s214, 4
          %s216 = scalar_lea.vmem %s2, %s215
          // Predicated region
          $region29: #{_scale_power.1} parent=27 // pred_check
            _
          $region30: #{_scale_power.1} parent=27 // pred_check_branch
            %218 = sbr.rel (0) target = $region32
          $region31: #{_scale_power.1} parent=27 // pred_region
            // Predicated region
            $region33: #{_scale_power.1} parent=31 // pred_check
              _
            $region34: #{_scale_power.1} parent=31 // pred_check_branch
              %220 = sbr.rel target = $region36
            $region35: #{_scale_power.1} parent=31 // pred_region
              // Predicated region
              $region48: #{_scale_power.1} parent=35 // pred_check
                _
              $region49: #{_scale_power.1} parent=35 // pred_check_branch
                %238 = sbr.rel (0) target = $region51
              $region50: #{_scale_power.1} parent=35 // pred_region
                loop: start=0, step=1, limit=1
                $region52: #{_scale_power.1} parent=50 // loop_pre_header
                  _
                $region53: #{_scale_power.1} parent=50 // loop_header
                  %s240 = sphi 0, %s244
                  %p241 = scmp.ge.s32.totalorder %s240, 1
                  %s245 = sphi %s216, %s216
                  %s246 = sphi %s212, %s212
                $region54: #{_scale_power.1} parent=50 // loop_header_branch
                  %243 = sbr.rel (%p241) target = $region58
                $region55: #{_scale_power.1} parent=50 // loop_body
                  _
                $region56: #{_scale_power.1} parent=50 // loop_footer
                  %s244 = sadd.s32 1, %s240
                $region57: #{_scale_power.1} parent=50 // loop_footer_branch
                  %239 = sbr.rel target = $region53
                $region58: #{_scale_power.1} parent=50 // loop_exit
                  _
                %s248 = ssub.s32 16, 1
                loop: start=0, step=1, limit=1
                $region59: #{_scale_power.1} parent=50 // loop_pre_header
                  _
                $region60: #{_scale_power.1} parent=50 // loop_header
                  %s250 = sphi 0, %s254
                  %p251 = scmp.ge.s32.totalorder %s250, 1
                  %s255 = sphi %s216, %s216
                  %s256 = sphi %s212, %s212
                $region61: #{_scale_power.1} parent=50 // loop_header_branch
                  %253 = sbr.rel (%p251) target = $region65
                $region62: #{_scale_power.1} parent=50 // loop_body
                  %v257 = vld [vmem:[%s255] sm:%s248]
                  %258 = vst [vmem:[%s256] sm:%s248] %v257
                  %v259 = vld [vmem:[%s255 + $0x8] sm:%s248]
                  %260 = vst [vmem:[%s256 + $0x4] sm:%s248] %v259
                $region63: #{_scale_power.1} parent=50 // loop_footer
                  %s254 = sadd.s32 1, %s250
                $region64: #{_scale_power.1} parent=50 // loop_footer_branch
                  %249 = sbr.rel target = $region60
                $region65: #{_scale_power.1} parent=50 // loop_exit
                  _
              $region51: #{_scale_power.1} parent=35 // pred_fallthru
                _
            $region36: #{_scale_power.1} parent=31 // pred_fallthru
              _
            // Predicated region
            $region37: #{_scale_power.1} parent=31 // pred_check
              _
            $region38: #{_scale_power.1} parent=31 // pred_check_branch
              %222 = sbr.rel (0) target = $region40
            $region39: #{_scale_power.1} parent=31 // pred_region
              %s224 = ssub.s32 16, 1
              loop: start=0, step=1, limit=1
              $region41: #{_scale_power.1} parent=39 // loop_pre_header
                _
              $region42: #{_scale_power.1} parent=39 // loop_header
                %s226 = sphi 0, %s230
                %p227 = scmp.ge.s32.totalorder %s226, 1
                %s231 = sphi %s216, %s216
                %s232 = sphi %s212, %s212
              $region43: #{_scale_power.1} parent=39 // loop_header_branch
                %229 = sbr.rel (%p227) target = $region47
              $region44: #{_scale_power.1} parent=39 // loop_body
                %v233 = vld [vmem:[%s231] sm:%s224]
                %234 = vst [vmem:[%s232] sm:%s224] %v233
                %v235 = vld [vmem:[%s231 + $0x8] sm:%s224]
                %236 = vst [vmem:[%s232 + $0x4] sm:%s224] %v235
              $region45: #{_scale_power.1} parent=39 // loop_footer
                %s230 = sadd.s32 1, %s226
              $region46: #{_scale_power.1} parent=39 // loop_footer_branch
                %225 = sbr.rel target = $region42
              $region47: #{_scale_power.1} parent=39 // loop_exit
                _
            $region40: #{_scale_power.1} parent=31 // pred_fallthru
              _
          $region32: #{_scale_power.1} parent=27 // pred_fallthru
            _
          %261 = vnop
        $region28: #{_scale_power.1} parent=23 // pred_fallthru
          _
        // Predicated region
        $region66: #{_scale_power.1} parent=23 // pred_check
          %p262 = pneg %p133
        $region67: #{_scale_power.1} parent=23 // pred_check_branch
          %264 = sbr.rel (%p262) target = $region69
        $region68: #{_scale_power.1} parent=23 // pred_region
          %s265 = sand.u32 %s123, 1
          %s266 = sand.u32 %s123, 1
          %s267 = smul.addr %s266, 8
          %s268 = scalar_lea.vmem [#allocation3], %s267
          %s269 = sadd.s32 %s19, 1
          %s270 = smul.addr %s18, 4
          %s271 = sadd.s32 %s269, %s270
          %s272 = smul.addr %s271, 4
          %s273 = scalar_lea.vmem %s3, %s272
          // Predicated region
          $region70: #{_scale_power.1} parent=68 // pred_check
            _
          $region71: #{_scale_power.1} parent=68 // pred_check_branch
            %275 = sbr.rel (0) target = $region73
          $region72: #{_scale_power.1} parent=68 // pred_region
            // Predicated region
            $region74: #{_scale_power.1} parent=72 // pred_check
              _
            $region75: #{_scale_power.1} parent=72 // pred_check_branch
              %277 = sbr.rel target = $region77
            $region76: #{_scale_power.1} parent=72 // pred_region
              // Predicated region
              $region89: #{_scale_power.1} parent=76 // pred_check
                _
              $region90: #{_scale_power.1} parent=76 // pred_check_branch
                %295 = sbr.rel (0) target = $region92
              $region91: #{_scale_power.1} parent=76 // pred_region
                loop: start=0, step=1, limit=1
                $region93: #{_scale_power.1} parent=91 // loop_pre_header
                  _
                $region94: #{_scale_power.1} parent=91 // loop_header
                  %s297 = sphi 0, %s301
                  %p298 = scmp.ge.s32.totalorder %s297, 1
                  %s302 = sphi %s273, %s273
                  %s303 = sphi %s268, %s268
                $region95: #{_scale_power.1} parent=91 // loop_header_branch
                  %300 = sbr.rel (%p298) target = $region99
                $region96: #{_scale_power.1} parent=91 // loop_body
                  _
                $region97: #{_scale_power.1} parent=91 // loop_footer
                  %s301 = sadd.s32 1, %s297
                $region98: #{_scale_power.1} parent=91 // loop_footer_branch
                  %296 = sbr.rel target = $region94
                $region99: #{_scale_power.1} parent=91 // loop_exit
                  _
                %s305 = ssub.s32 16, 1
                loop: start=0, step=1, limit=1
                $region100: #{_scale_power.1} parent=91 // loop_pre_header
                  _
                $region101: #{_scale_power.1} parent=91 // loop_header
                  %s307 = sphi 0, %s311
                  %p308 = scmp.ge.s32.totalorder %s307, 1
                  %s312 = sphi %s273, %s273
                  %s313 = sphi %s268, %s268
                $region102: #{_scale_power.1} parent=91 // loop_header_branch
                  %310 = sbr.rel (%p308) target = $region106
                $region103: #{_scale_power.1} parent=91 // loop_body
                  %v314 = vld [vmem:[%s312] sm:%s305]
                  %315 = vst [vmem:[%s313] sm:%s305] %v314
                  %v316 = vld [vmem:[%s312 + $0x8] sm:%s305]
                  %317 = vst [vmem:[%s313 + $0x4] sm:%s305] %v316
                $region104: #{_scale_power.1} parent=91 // loop_footer
                  %s311 = sadd.s32 1, %s307
                $region105: #{_scale_power.1} parent=91 // loop_footer_branch
                  %306 = sbr.rel target = $region101
                $region106: #{_scale_power.1} parent=91 // loop_exit
                  _
              $region92: #{_scale_power.1} parent=76 // pred_fallthru
                _
            $region77: #{_scale_power.1} parent=72 // pred_fallthru
              _
            // Predicated region
            $region78: #{_scale_power.1} parent=72 // pred_check
              _
            $region79: #{_scale_power.1} parent=72 // pred_check_branch
              %279 = sbr.rel (0) target = $region81
            $region80: #{_scale_power.1} parent=72 // pred_region
              %s281 = ssub.s32 16, 1
              loop: start=0, step=1, limit=1
              $region82: #{_scale_power.1} parent=80 // loop_pre_header
                _
              $region83: #{_scale_power.1} parent=80 // loop_header
                %s283 = sphi 0, %s287
                %p284 = scmp.ge.s32.totalorder %s283, 1
                %s288 = sphi %s273, %s273
                %s289 = sphi %s268, %s268
              $region84: #{_scale_power.1} parent=80 // loop_header_branch
                %286 = sbr.rel (%p284) target = $region88
              $region85: #{_scale_power.1} parent=80 // loop_body
                %v290 = vld [vmem:[%s288] sm:%s281]
                %291 = vst [vmem:[%s289] sm:%s281] %v290
                %v292 = vld [vmem:[%s288 + $0x8] sm:%s281]
                %293 = vst [vmem:[%s289 + $0x4] sm:%s281] %v292
              $region86: #{_scale_power.1} parent=80 // loop_footer
                %s287 = sadd.s32 1, %s283
              $region87: #{_scale_power.1} parent=80 // loop_footer_branch
                %282 = sbr.rel target = $region83
              $region88: #{_scale_power.1} parent=80 // loop_exit
                _
            $region81: #{_scale_power.1} parent=72 // pred_fallthru
              _
          $region73: #{_scale_power.1} parent=68 // pred_fallthru
            _
          %318 = vnop
        $region69: #{_scale_power.1} parent=23 // pred_fallthru
          _
      $region24: #{_scale_power.1} parent=5 // pred_fallthru
        _
      %p319 = scmp.le.s32.totalorder 1, %s10
      %p320 = scmp.lt.s32.totalorder %s10, 3
      %p321 = pnand %p319, %p320
      %p322 = pneg %p321
      // Predicated region
      $region107: #{_scale_power.1} parent=5 // pred_check
        _
      $region108: #{_scale_power.1} parent=5 // pred_check_branch
        %324 = sbr.rel (%p321) target = $region110
      $region109: #{_scale_power.1} parent=5 // pred_region
        %s325 = ssub.s32 %s10, 1
        %s326 = sand.u32 %s96, 1
        %s327 = sand.u32 %s96, 1
        %s328 = smul.addr %s327, 8
        %s329 = scalar_lea.vmem [#allocation2], %s328
        // Predicated region
        $region111: #{_scale_power.1} parent=109 // pred_check
          %p330 = pneg %p109
        $region112: #{_scale_power.1} parent=109 // pred_check_branch
          %332 = sbr.rel (%p330) target = $region114
        $region113: #{_scale_power.1} parent=109 // pred_region
          _
        $region114: #{_scale_power.1} parent=109 // pred_fallthru
          _
        %s333 = sand.u32 %s126, 1
        %s334 = sand.u32 %s126, 1
        %s335 = smul.addr %s334, 8
        %s336 = scalar_lea.vmem [#allocation3], %s335
        // Predicated region
        $region115: #{_scale_power.1} parent=109 // pred_check
          %p337 = pneg %p139
        $region116: #{_scale_power.1} parent=109 // pred_check_branch
          %339 = sbr.rel (%p337) target = $region118
        $region117: #{_scale_power.1} parent=109 // pred_region
          _
        $region118: #{_scale_power.1} parent=109 // pred_fallthru
          _
        %s340 = smul.u32 5, %s20
        %p341 = scmp.lt.s32.totalorder %s340, 4
        %s342 = scalar_select %p341, %s340, 4
        %s343 = smul.addr %s342, 4
        %s344 = scalar_lea.vmem %s0, %s343
        %p345 = pneg %p55
        %p346 = pneg %p52
        %s347 = smul.u32 5, %s20
        %p348 = scmp.lt.s32.totalorder %s347, 4
        %s349 = scalar_select %p348, %s347, 4
        %s350 = smul.addr %s349, 4
        %s351 = scalar_lea.vmem %s1, %s350
        %p352 = pneg %p81
        %p353 = pneg %p78
        %s354 = sand.u32 %s96, 1
        %s355 = sand.u32 %s96, 1
        %s356 = smul.addr %s355, 8
        %s357 = scalar_lea.vmem [#allocation2], %s356
        %p358 = pneg %p109
        %p359 = pneg %p106
        %s360 = sand.u32 %s126, 1
        %s361 = sand.u32 %s126, 1
        %s362 = smul.addr %s361, 8
        %s363 = scalar_lea.vmem [#allocation3], %s362
        %p364 = pneg %p139
        %p365 = pneg %p136
        %p366 = pneg %p169
        %p367 = pneg %p166
        %s368 = smul.u32 5, %s20
        %p369 = scmp.lt.s32.totalorder %s21, 1
        %s370 = scalar_select %p369, %s21, 1
        %p371 = scmp.lt.s32.totalorder %s368, 4
        %s372 = scalar_select %p371, %s368, 4
        %p373 = scmp.lt.s32.totalorder %s22, 0
        %s374 = scalar_select %p373, %s22, 0
        %s375 = sadd.s32 %s374, %s372
        %s376 = smul.addr %s370, 5
        %s377 = sadd.s32 %s375, %s376
        %s378 = smul.addr %s377, 8
        %s379 = scalar_lea.vmem %s4, %s378
        %s380 = smul.u32 5, %s20
        %p381 = scmp.lt.s32.totalorder %s380, 4
        %s382 = scalar_select %p381, %s380, 4
        %s383 = smul.addr %s382, 4
        %s384 = scalar_lea.vmem %s0, %s383
        %s385 = smul.u32 5, %s20
        %s386 = smul.u32 5, %s20
        %p387 = scmp.lt.s32.totalorder %s386, 4
        %s388 = scalar_select %p387, %s386, 4
        %s389 = smul.addr %s388, 4
        %s390 = scalar_lea.vmem %s1, %s389
        %s391 = smul.u32 5, %s20
        %s392 = sadd.s32 %s22, 1
        %s393 = smul.u32 5, %s20
        %p394 = scmp.lt.s32.totalorder %s21, 1
        %s395 = scalar_select %p394, %s21, 1
        %p396 = scmp.lt.s32.totalorder %s393, 4
        %s397 = scalar_select %p396, %s393, 4
        %p398 = scmp.lt.s32.totalorder %s22, 0
        %s399 = scalar_select %p398, %s22, 0
        %s400 = sadd.s32 %s399, %s397
        %s401 = smul.addr %s395, 5
        %s402 = sadd.s32 %s400, %s401
        %s403 = smul.addr %s402, 8
        %s404 = scalar_lea.vmem %s4, %s403
        %s405 = smul.u32 5, %s20
        %v407 = vld [vmem:[%s329] sm:$0xf]
        %v408 = vld [vmem:[%s329 + $0x4] sm:$0xf]
        %v409 = vld [vmem:[%s336] sm:$0xf]
        %v410 = vld [vmem:[%s336 + $0x4] sm:$0xf]
        %v413 = vunpack.c.l.b16 %v407
        %v414 = vunpack.c.l.b16 %v408
        %v415 = vpack.c.b16 %v414, %v413
        %v419 = vunpack.c.l.b16 %v409
        %v420 = vunpack.c.l.b16 %v410
        %v421 = vpack.c.b16 %v420, %v419
        %v422 = vld [vmem:[%s384] sm:$0xf]
        %v423 = vld [vmem:[%s384 + $0x4] sm:$0xf]
        %v424 = vld [vmem:[%s384 + $0x8] sm:$0xf]
        %v425 = vld [vmem:[%s384 + $0xc] sm:$0xf]
        %v426 = vld [vmem:[%s384 + $0x10] sm:$0xf]
        %v427 = vld [vmem:[%s390] sm:$0xf]
        %v428 = vld [vmem:[%s390 + $0x4] sm:$0xf]
        %v429 = vld [vmem:[%s390 + $0x8] sm:$0xf]
        %v430 = vld [vmem:[%s390 + $0xc] sm:$0xf]
        %v431 = vld [vmem:[%s390 + $0x10] sm:$0xf]
        %s432 = scalar_lea.vmem %s384, 20
        %v433 = vld [vmem:[%s432] sm:$0xf]
        %v434 = vld [vmem:[%s432 + $0x4] sm:$0xf]
        %v435 = vld [vmem:[%s432 + $0x8] sm:$0xf]
        %v436 = vld [vmem:[%s432 + $0xc] sm:$0xf]
        %v437 = vld [vmem:[%s432 + $0x10] sm:$0xf]
        %v443 = vunpack.c.l.b16 %v433
        %v444 = vunpack.c.l.b16 %v434
        %v445 = vunpack.c.l.b16 %v435
        %v446 = vunpack.c.l.b16 %v436
        %v447 = vunpack.c.l.b16 %v437
        %v448 = vpack.c.b16 %v444, %v443
        %v449 = vpack.c.b16 %v446, %v445
        %v450 = vpack.c.b16 %v447, %v447
        %451 = vrot.lane.b32.xlu0 %v415, 127
        %v452 = vpop.permute.xlu0 %451
        %453 = vrot.lane.b32.xlu0 %v421, 127
        %v454 = vpop.permute.xlu0 %453
        %vm455 = vcmask 1039360
        %v456 = vsel %vm455, %v452, %v454
        %vm458 = vcmask 130048
        %v460 = vsel %vm458, %v448, 0
        %v463 = vsel %vm458, %v449, 0
        %v466 = vsel %vm458, %v450, 0
        %468 = vmatpush.bf16.msra.mxu0 0
        %469 = vmatpush.bf16.msra.mxu0 0
        %470 = vmatpush.bf16.msra.mxu0 0
        %471 = vmatpush.bf16.msra.mxu0 0
        %472 = vmatpush.bf16.msra.mxu0 0
        %473 = vmatpush.bf16.msra.mxu0 0
        %474 = vmatpush.bf16.msra.mxu0 0
        %475 = vmatpush.bf16.msra.mxu0 %v456
        %476 = vmatmul.bf16.gmra.mxu0 %v460
        %v477 = vpop.f32.mrf.mxu0
        %v478 = vadd.f32 0.0, %v477
        %v479 = vpop.f32.mrf.mxu0
        %v480 = vadd.f32 0.0, %v479
        %481 = vmatmul.bf16.gmra.mxu0 %v463
        %v482 = vpop.f32.mrf.mxu0
        %v483 = vadd.f32 0.0, %v482
        %v484 = vpop.f32.mrf.mxu0
        %v485 = vadd.f32 0.0, %v484
        %486 = vmatmul.bf16.gmra.mxu0 %v466
        %v487 = vpop.f32.mrf.mxu0
        %v488 = vadd.f32 0.0, %v487
        %v489 = vpop.f32.mrf.mxu0
        %490 = vdwg.mxu0
        %v496 = vunpack.c.l.b16 %v422
        %v497 = vunpack.c.l.b16 %v423
        %v498 = vunpack.c.l.b16 %v424
        %v499 = vunpack.c.l.b16 %v425
        %v500 = vunpack.c.l.b16 %v426
        %v501 = vpack.c.b16 %v497, %v496
        %v502 = vpack.c.b16 %v499, %v498
        %v503 = vpack.c.b16 %v500, %v500
        %v505 = vsel %vm458, %v501, 0
        %v508 = vsel %vm458, %v502, 0
        %v511 = vsel %vm458, %v503, 0
        %513 = vmatpush.bf16.msra.mxu0 0
        %514 = vmatpush.bf16.msra.mxu0 0
        %515 = vmatpush.bf16.msra.mxu0 0
        %516 = vmatpush.bf16.msra.mxu0 0
        %517 = vmatpush.bf16.msra.mxu0 0
        %518 = vmatpush.bf16.msra.mxu0 0
        %519 = vmatpush.bf16.msra.mxu0 0
        %520 = vmatpush.bf16.msra.mxu0 %v415
        %521 = vmatmul.bf16.gmra.mxu0 %v505
        %v522 = vpop.f32.mrf.mxu0
        %v523 = vadd.f32 %v478, %v522
        %v524 = vpop.f32.mrf.mxu0
        %v525 = vadd.f32 %v480, %v524
        %526 = vmatmul.bf16.gmra.mxu0 %v508
        %v527 = vpop.f32.mrf.mxu0
        %v528 = vadd.f32 %v483, %v527
        %v529 = vpop.f32.mrf.mxu0
        %v530 = vadd.f32 %v485, %v529
        %531 = vmatmul.bf16.gmra.mxu0 %v511
        %v532 = vpop.f32.mrf.mxu0
        %v533 = vadd.f32 %v488, %v532
        %v534 = vpop.f32.mrf.mxu0
        %535 = vdwg.mxu0
        %s536 = scalar_lea.vmem %s390, 20
        %v537 = vld [vmem:[%s536] sm:$0xf]
        %v538 = vld [vmem:[%s536 + $0x4] sm:$0xf]
        %v539 = vld [vmem:[%s536 + $0x8] sm:$0xf]
        %v540 = vld [vmem:[%s536 + $0xc] sm:$0xf]
        %v541 = vld [vmem:[%s536 + $0x10] sm:$0xf]
        %v547 = vunpack.c.l.b16 %v537
        %v548 = vunpack.c.l.b16 %v538
        %v549 = vunpack.c.l.b16 %v539
        %v550 = vunpack.c.l.b16 %v540
        %v551 = vunpack.c.l.b16 %v541
        %v552 = vpack.c.b16 %v548, %v547
        %v553 = vpack.c.b16 %v550, %v549
        %v554 = vpack.c.b16 %v551, %v551
        %v556 = vsel %vm458, %v552, 0
        %v559 = vsel %vm458, %v553, 0
        %v562 = vsel %vm458, %v554, 0
        %564 = vmatpush.bf16.msra.mxu0 0
        %565 = vmatpush.bf16.msra.mxu0 0
        %566 = vmatpush.bf16.msra.mxu0 0
        %567 = vmatpush.bf16.msra.mxu0 0
        %568 = vmatpush.bf16.msra.mxu0 0
        %569 = vmatpush.bf16.msra.mxu0 0
        %570 = vmatpush.bf16.msra.mxu0 0
        %571 = vmatpush.bf16.msra.mxu0 %v456
        %572 = vmatmul.bf16.gmra.mxu0 %v556
        %v573 = vpop.f32.mrf.mxu0
        %v574 = vadd.f32 0.0, %v573
        %v575 = vpop.f32.mrf.mxu0
        %v576 = vadd.f32 0.0, %v575
        %577 = vmatmul.bf16.gmra.mxu0 %v559
        %v578 = vpop.f32.mrf.mxu0
        %v579 = vadd.f32 0.0, %v578
        %v580 = vpop.f32.mrf.mxu0
        %v581 = vadd.f32 0.0, %v580
        %582 = vmatmul.bf16.gmra.mxu0 %v562
        %v583 = vpop.f32.mrf.mxu0
        %v584 = vadd.f32 0.0, %v583
        %v585 = vpop.f32.mrf.mxu0
        %586 = vdwg.mxu0
        %v592 = vunpack.c.l.b16 %v427
        %v593 = vunpack.c.l.b16 %v428
        %v594 = vunpack.c.l.b16 %v429
        %v595 = vunpack.c.l.b16 %v430
        %v596 = vunpack.c.l.b16 %v431
        %v597 = vpack.c.b16 %v593, %v592
        %v598 = vpack.c.b16 %v595, %v594
        %v599 = vpack.c.b16 %v596, %v596
        %v601 = vsel %vm458, %v597, 0
        %v604 = vsel %vm458, %v598, 0
        %v607 = vsel %vm458, %v599, 0
        %609 = vmatpush.bf16.msra.mxu0 0
        %610 = vmatpush.bf16.msra.mxu0 0
        %611 = vmatpush.bf16.msra.mxu0 0
        %612 = vmatpush.bf16.msra.mxu0 0
        %613 = vmatpush.bf16.msra.mxu0 0
        %614 = vmatpush.bf16.msra.mxu0 0
        %615 = vmatpush.bf16.msra.mxu0 0
        %616 = vmatpush.bf16.msra.mxu0 %v415
        %617 = vmatmul.bf16.gmra.mxu0 %v601
        %v618 = vpop.f32.mrf.mxu0
        %v619 = vadd.f32 %v574, %v618
        %v620 = vpop.f32.mrf.mxu0
        %v621 = vadd.f32 %v576, %v620
        %622 = vmatmul.bf16.gmra.mxu0 %v604
        %v623 = vpop.f32.mrf.mxu0
        %v624 = vadd.f32 %v579, %v623
        %v625 = vpop.f32.mrf.mxu0
        %v626 = vadd.f32 %v581, %v625
        %627 = vmatmul.bf16.gmra.mxu0 %v607
        %v628 = vpop.f32.mrf.mxu0
        %v629 = vadd.f32 %v584, %v628
        %v630 = vpop.f32.mrf.mxu0
        %631 = vdwg.mxu0
        %s632 = scalar_lea.vmem %s384, 40
        %v633 = vld [vmem:[%s632] sm:$0xf]
        %v634 = vld [vmem:[%s632 + $0x4] sm:$0xf]
        %v635 = vld [vmem:[%s632 + $0x8] sm:$0xf]
        %v636 = vld [vmem:[%s632 + $0xc] sm:$0xf]
        %v637 = vld [vmem:[%s632 + $0x10] sm:$0xf]
        %v643 = vunpack.c.l.b16 %v633
        %v644 = vunpack.c.l.b16 %v634
        %v645 = vunpack.c.l.b16 %v635
        %v646 = vunpack.c.l.b16 %v636
        %v647 = vunpack.c.l.b16 %v637
        %v648 = vpack.c.b16 %v644, %v643
        %v649 = vpack.c.b16 %v646, %v645
        %v650 = vpack.c.b16 %v647, %v647
        %651 = vrot.lane.b32.xlu0 %v415, 126
        %v652 = vpop.permute.xlu0 %651
        %653 = vrot.lane.b32.xlu0 %v421, 126
        %v654 = vpop.permute.xlu0 %653
        %vm655 = vcmask 1031168
        %v656 = vsel %vm655, %v652, %v654
        %v659 = vsel %vm458, %v648, 0
        %v662 = vsel %vm458, %v649, 0
        %v665 = vsel %vm458, %v650, 0
        %667 = vmatpush.bf16.msra.mxu0 0
        %668 = vmatpush.bf16.msra.mxu0 0
        %669 = vmatpush.bf16.msra.mxu0 0
        %670 = vmatpush.bf16.msra.mxu0 0
        %671 = vmatpush.bf16.msra.mxu0 0
        %672 = vmatpush.bf16.msra.mxu0 0
        %673 = vmatpush.bf16.msra.mxu0 0
        %674 = vmatpush.bf16.msra.mxu0 %v656
        %675 = vmatmul.bf16.gmra.mxu0 %v659
        %v676 = vpop.f32.mrf.mxu0
        %v677 = vadd.f32 0.0, %v676
        %v678 = vpop.f32.mrf.mxu0
        %v679 = vadd.f32 0.0, %v678
        %680 = vmatmul.bf16.gmra.mxu0 %v662
        %v681 = vpop.f32.mrf.mxu0
        %v682 = vadd.f32 0.0, %v681
        %v683 = vpop.f32.mrf.mxu0
        %v684 = vadd.f32 0.0, %v683
        %685 = vmatmul.bf16.gmra.mxu0 %v665
        %v686 = vpop.f32.mrf.mxu0
        %v687 = vadd.f32 0.0, %v686
        %v688 = vpop.f32.mrf.mxu0
        %689 = vdwg.mxu0
        %v690 = vadd.f32 %v523, %v677
        %v691 = vadd.f32 %v525, %v679
        %v692 = vadd.f32 %v528, %v682
        %v693 = vadd.f32 %v530, %v684
        %v694 = vadd.f32 %v533, %v687
        %s695 = scalar_lea.vmem %s390, 40
        %v696 = vld [vmem:[%s695] sm:$0xf]
        %v697 = vld [vmem:[%s695 + $0x4] sm:$0xf]
        %v698 = vld [vmem:[%s695 + $0x8] sm:$0xf]
        %v699 = vld [vmem:[%s695 + $0xc] sm:$0xf]
        %v700 = vld [vmem:[%s695 + $0x10] sm:$0xf]
        %v706 = vunpack.c.l.b16 %v696
        %v707 = vunpack.c.l.b16 %v697
        %v708 = vunpack.c.l.b16 %v698
        %v709 = vunpack.c.l.b16 %v699
        %v710 = vunpack.c.l.b16 %v700
        %v711 = vpack.c.b16 %v707, %v706
        %v712 = vpack.c.b16 %v709, %v708
        %v713 = vpack.c.b16 %v710, %v710
        %v715 = vsel %vm458, %v711, 0
        %v718 = vsel %vm458, %v712, 0
        %v721 = vsel %vm458, %v713, 0
        %723 = vmatpush.bf16.msra.mxu0 0
        %724 = vmatpush.bf16.msra.mxu0 0
        %725 = vmatpush.bf16.msra.mxu0 0
        %726 = vmatpush.bf16.msra.mxu0 0
        %727 = vmatpush.bf16.msra.mxu0 0
        %728 = vmatpush.bf16.msra.mxu0 0
        %729 = vmatpush.bf16.msra.mxu0 0
        %730 = vmatpush.bf16.msra.mxu0 %v656
        %731 = vmatmul.bf16.gmra.mxu0 %v715
        %v732 = vpop.f32.mrf.mxu0
        %v733 = vadd.f32 0.0, %v732
        %v734 = vpop.f32.mrf.mxu0
        %v735 = vadd.f32 0.0, %v734
        %736 = vmatmul.bf16.gmra.mxu0 %v718
        %v737 = vpop.f32.mrf.mxu0
        %v738 = vadd.f32 0.0, %v737
        %v739 = vpop.f32.mrf.mxu0
        %v740 = vadd.f32 0.0, %v739
        %741 = vmatmul.bf16.gmra.mxu0 %v721
        %v742 = vpop.f32.mrf.mxu0
        %v743 = vadd.f32 0.0, %v742
        %v744 = vpop.f32.mrf.mxu0
        %745 = vdwg.mxu0
        %v746 = vadd.f32 %v619, %v733
        %v747 = vadd.f32 %v621, %v735
        %v748 = vadd.f32 %v624, %v738
        %v749 = vadd.f32 %v626, %v740
        %v750 = vadd.f32 %v629, %v743
        %s751 = scalar_lea.vmem %s384, 60
        %v752 = vld [vmem:[%s751] sm:$0xf]
        %v753 = vld [vmem:[%s751 + $0x4] sm:$0xf]
        %v754 = vld [vmem:[%s751 + $0x8] sm:$0xf]
        %v755 = vld [vmem:[%s751 + $0xc] sm:$0xf]
        %v756 = vld [vmem:[%s751 + $0x10] sm:$0xf]
        %v762 = vunpack.c.l.b16 %v752
        %v763 = vunpack.c.l.b16 %v753
        %v764 = vunpack.c.l.b16 %v754
        %v765 = vunpack.c.l.b16 %v755
        %v766 = vunpack.c.l.b16 %v756
        %v767 = vpack.c.b16 %v763, %v762
        %v768 = vpack.c.b16 %v765, %v764
        %v769 = vpack.c.b16 %v766, %v766
        %770 = vrot.lane.b32.xlu0 %v415, 125
        %v771 = vpop.permute.xlu0 %770
        %772 = vrot.lane.b32.xlu0 %v421, 125
        %v773 = vpop.permute.xlu0 %772
        %vm774 = vcmask 1022976
        %v775 = vsel %vm774, %v771, %v773
        %v778 = vsel %vm458, %v767, 0
        %v781 = vsel %vm458, %v768, 0
        %v784 = vsel %vm458, %v769, 0
        %786 = vmatpush.bf16.msra.mxu0 0
        %787 = vmatpush.bf16.msra.mxu0 0
        %788 = vmatpush.bf16.msra.mxu0 0
        %789 = vmatpush.bf16.msra.mxu0 0
        %790 = vmatpush.bf16.msra.mxu0 0
        %791 = vmatpush.bf16.msra.mxu0 0
        %792 = vmatpush.bf16.msra.mxu0 0
        %793 = vmatpush.bf16.msra.mxu0 %v775
        %794 = vmatmul.bf16.gmra.mxu0 %v778
        %v795 = vpop.f32.mrf.mxu0
        %v796 = vadd.f32 0.0, %v795
        %v797 = vpop.f32.mrf.mxu0
        %v798 = vadd.f32 0.0, %v797
        %799 = vmatmul.bf16.gmra.mxu0 %v781
        %v800 = vpop.f32.mrf.mxu0
        %v801 = vadd.f32 0.0, %v800
        %v802 = vpop.f32.mrf.mxu0
        %v803 = vadd.f32 0.0, %v802
        %804 = vmatmul.bf16.gmra.mxu0 %v784
        %v805 = vpop.f32.mrf.mxu0
        %v806 = vadd.f32 0.0, %v805
        %v807 = vpop.f32.mrf.mxu0
        %808 = vdwg.mxu0
        %v809 = vadd.f32 %v690, %v796
        %v810 = vadd.f32 %v691, %v798
        %v811 = vadd.f32 %v692, %v801
        %v812 = vadd.f32 %v693, %v803
        %v813 = vadd.f32 %v694, %v806
        %s814 = scalar_lea.vmem %s390, 60
        %v815 = vld [vmem:[%s814] sm:$0xf]
        %v816 = vld [vmem:[%s814 + $0x4] sm:$0xf]
        %v817 = vld [vmem:[%s814 + $0x8] sm:$0xf]
        %v818 = vld [vmem:[%s814 + $0xc] sm:$0xf]
        %v819 = vld [vmem:[%s814 + $0x10] sm:$0xf]
        %v825 = vunpack.c.l.b16 %v815
        %v826 = vunpack.c.l.b16 %v816
        %v827 = vunpack.c.l.b16 %v817
        %v828 = vunpack.c.l.b16 %v818
        %v829 = vunpack.c.l.b16 %v819
        %v830 = vpack.c.b16 %v826, %v825
        %v831 = vpack.c.b16 %v828, %v827
        %v832 = vpack.c.b16 %v829, %v829
        %v834 = vsel %vm458, %v830, 0
        %v837 = vsel %vm458, %v831, 0
        %v840 = vsel %vm458, %v832, 0
        %842 = vmatpush.bf16.msra.mxu0 0
        %843 = vmatpush.bf16.msra.mxu0 0
        %844 = vmatpush.bf16.msra.mxu0 0
        %845 = vmatpush.bf16.msra.mxu0 0
        %846 = vmatpush.bf16.msra.mxu0 0
        %847 = vmatpush.bf16.msra.mxu0 0
        %848 = vmatpush.bf16.msra.mxu0 0
        %849 = vmatpush.bf16.msra.mxu0 %v775
        %850 = vmatmul.bf16.gmra.mxu0 %v834
        %v851 = vpop.f32.mrf.mxu0
        %v852 = vadd.f32 0.0, %v851
        %v853 = vpop.f32.mrf.mxu0
        %v854 = vadd.f32 0.0, %v853
        %855 = vmatmul.bf16.gmra.mxu0 %v837
        %v856 = vpop.f32.mrf.mxu0
        %v857 = vadd.f32 0.0, %v856
        %v858 = vpop.f32.mrf.mxu0
        %v859 = vadd.f32 0.0, %v858
        %860 = vmatmul.bf16.gmra.mxu0 %v840
        %v861 = vpop.f32.mrf.mxu0
        %v862 = vadd.f32 0.0, %v861
        %v863 = vpop.f32.mrf.mxu0
        %864 = vdwg.mxu0
        %v865 = vadd.f32 %v746, %v852
        %v866 = vadd.f32 %v747, %v854
        %v867 = vadd.f32 %v748, %v857
        %v868 = vadd.f32 %v749, %v859
        %v869 = vadd.f32 %v750, %v862
        %v870 = vmul.f32 %v809, %v809
        %v871 = vmul.f32 %v810, %v810
        %v872 = vmul.f32 %v811, %v811
        %v873 = vmul.f32 %v812, %v812
        %v874 = vmul.f32 %v813, %v813
        %v875 = vmul.f32 %v865, %v865
        %v876 = vmul.f32 %v866, %v866
        %v877 = vmul.f32 %v867, %v867
        %v878 = vmul.f32 %v868, %v868
        %v879 = vmul.f32 %v869, %v869
        %v880 = vadd.f32 %v870, %v875
        %v881 = vadd.f32 %v871, %v876
        %v882 = vadd.f32 %v872, %v877
        %v883 = vadd.f32 %v873, %v878
        %v884 = vadd.f32 %v874, %v879
        %885 = vst [vmem:[%s404] sm:$0xff] %v880
        %886 = vst [vmem:[%s404 + $0x8] sm:$0xff] %v881
        %887 = vst [vmem:[%s404 + $0x10] sm:$0xff] %v882
        %888 = vst [vmem:[%s404 + $0x18] sm:$0xff] %v883
        %889 = vst [vmem:[%s404 + $0x20] sm:$0xff] %v884
        %s890 = smul.u32 5, %s20
        %p891 = scmp.lt.s32.totalorder %s21, 1
        %s892 = scalar_select %p891, %s21, 1
        %p893 = scmp.lt.s32.totalorder %s890, 4
        %s894 = scalar_select %p893, %s890, 4
        %p895 = scmp.lt.s32.totalorder %s22, 0
        %s896 = scalar_select %p895, %s22, 0
        %s897 = sadd.s32 %s896, %s894
        %s898 = smul.addr %s892, 5
        %s899 = sadd.s32 %s897, %s898
        %s900 = smul.addr %s899, 8
        %s901 = scalar_lea.vmem %s4, %s900
        // Predicated region
        $region119: #{_scale_power.1} parent=109 // pred_check
          %p902 = pneg %p166
        $region120: #{_scale_power.1} parent=109 // pred_check_branch
          %904 = sbr.rel (%p902) target = $region122
        $region121: #{_scale_power.1} parent=109 // pred_region
          %s905 = smul.u32 5, %s20
        $region122: #{_scale_power.1} parent=109 // pred_fallthru
          _
      $region110: #{_scale_power.1} parent=5 // pred_fallthru
        _
      %p906 = scmp.le.s32.totalorder 2, %s10
      // Predicated region
      $region123: #{_scale_power.1} parent=5 // pred_check
        %p907 = pneg %p906
      $region124: #{_scale_power.1} parent=5 // pred_check_branch
        %909 = sbr.rel (%p907) target = $region126
      $region125: #{_scale_power.1} parent=5 // pred_region
        %s910 = ssub.s32 %s10, 2
        // Predicated region
        $region127: #{_scale_power.1} parent=125 // pred_check
          %p911 = pneg %p172
        $region128: #{_scale_power.1} parent=125 // pred_check_branch
          %913 = sbr.rel (%p911) target = $region130
        $region129: #{_scale_power.1} parent=125 // pred_region
          %s914 = smul.u32 5, %s23
          %p915 = scmp.lt.s32.totalorder %s24, 1
          %s916 = scalar_select %p915, %s24, 1
          %p917 = scmp.lt.s32.totalorder %s914, 4
          %s918 = scalar_select %p917, %s914, 4
          %p919 = scmp.lt.s32.totalorder %s25, 0
          %s920 = scalar_select %p919, %s25, 0
          %s921 = sadd.s32 %s920, %s918
          %s922 = smul.addr %s916, 5
          %s923 = sadd.s32 %s921, %s922
          %s924 = smul.addr %s923, 8
          %s925 = scalar_lea.vmem %s4, %s924
        $region130: #{_scale_power.1} parent=125 // pred_fallthru
          _
      $region126: #{_scale_power.1} parent=5 // pred_fallthru
        _
    $region6: #{_scale_power.1} parent=1 // loop_footer
      %s14 = sadd.s32 1, %s10
    $region7: #{_scale_power.1} parent=1 // loop_footer_branch
      %9 = sbr.rel target = $region3
    $region8: #{_scale_power.1} parent=1 // loop_exit
      _

</llo_original>
